<compile_context>
chip_gen: v6e
topology: v6e:2x2x1
jax: 0.10.0
libtpu: 0.0.40
codegen_flags: <defaults>
</compile_context>

<pallas_src>
import functools
import math

import jax
import jax.numpy as jnp
from jax import lax
from jax.experimental import pallas as pl
from jax.experimental.pallas import tpu as pltpu


# ---------------------------------------------------------------------------
# helpers
# ---------------------------------------------------------------------------

def _layernorm_f32(v, w, b, eps=1e-5):
    """torch.nn.LayerNorm semantics: f32 stats, biased variance, eps=1e-5."""
    mu = jnp.mean(v, axis=-1, keepdims=True)
    var = jnp.mean((v - mu) ** 2, axis=-1, keepdims=True)
    return (v - mu) * lax.rsqrt(var + eps) * w + b


def _full_spec(arr):
    """Whole-array block with a constant index map (fetched once across the grid)."""
    zeros = (0,) * arr.ndim
    return pl.BlockSpec(arr.shape, lambda n, _z=zeros: _z)


def _choose_block_patches(num_patches, batch, target_rows=256):
    """Largest patch-tile TP (dividing NP) whose row count TP*B is sublane-legal and fits."""
    divisors = [tp for tp in range(1, num_patches + 1) if num_patches % tp == 0]
    legal = [tp for tp in divisors if (tp * batch) % 8 == 0 or tp == num_patches]
    fitting = [tp for tp in legal if tp * batch <= target_rows]
    return max(fitting) if fitting else min(legal)


# ---------------------------------------------------------------------------
# kernels
# ---------------------------------------------------------------------------

def patch_embed_kernel(patch_ref, wpT_ref, pos_ref, o_ref):
    # patch_ref: (R, K) f32   wpT_ref: (K, E) bf16   pos_ref: (R, E) f32
    p = patch_ref[...].astype(jnp.bfloat16)
    emb = jnp.dot(p, wpT_ref[...], preferred_element_type=jnp.float32)   # (R, E) f32 acc
    o_ref[...] = (emb + pos_ref[...]).astype(o_ref.dtype)


def encoder_layer_kernel(
    x_ref,                         # (R, E) f32 -- R = TP*B patch-major rows
    bias_ref,                      # (R, R) f32 block-diagonal additive mask (0 / -1e30)
    wq_ref, wk_ref, wv_ref,        # (H, E, Dh) bf16  (q weights pre-scaled by 1/sqrt(Dh))
    bq_ref, bk_ref, bv_ref,        # (H, 1, Dh) f32
    wo_ref,                        # (H, Dh, E) bf16  (out-proj split per head)
    bo_ref,                        # (1, E) f32
    ln1_w_ref, ln1_b_ref,          # (1, E) f32
    w1_ref, b1_ref,                # (E, F) bf16, (1, F) f32
    w2_ref, b2_ref,                # (F, E) bf16, (1, E) f32
    ln2_w_ref, ln2_b_ref,          # (1, E) f32
    o_ref,                         # (R, E) f32
):
    bf16, f32 = jnp.bfloat16, jnp.float32

    x = x_ref[...].astype(f32)                            # (R, E) residual path in f32
    R, E = x.shape
    H = wq_ref.shape[0]

    # ---- multi-head self-attention, heads batched via 3-D dot_general ----
    xb = jnp.broadcast_to(x.astype(bf16)[None], (H, R, E))   # (H, R, E) bf16 operands
    proj_dn = (((2,), (1,)), ((0,), (0,)))                    # contract E, batch over H

    q = lax.dot_general(xb, wq_ref[...], proj_dn, preferred_element_type=f32) + bq_ref[...]
    k = lax.dot_general(xb, wk_ref[...], proj_dn, preferred_element_type=f32) + bk_ref[...]
    v = lax.dot_general(xb, wv_ref[...], proj_dn, preferred_element_type=f32) + bv_ref[...]
    # q/k/v: (H, R, Dh), f32

    s = lax.dot_general(q.astype(bf16), k.astype(bf16),
                        (((2,), (2,)), ((0,), (0,))),
                        preferred_element_type=f32)           # (H, R, R)
    s = s + bias_ref[...]                                     # keep only same-patch pairs

    s = s - jnp.max(s, axis=-1, keepdims=True)                # f32 softmax
    p = jnp.exp(s)
    p = p * pl.reciprocal(jnp.sum(p, axis=-1, keepdims=True), approx=True)

    ctx = lax.dot_general(p.astype(bf16), v.astype(bf16),
                          (((2,), (1,)), ((0,), (0,))),
                          preferred_element_type=f32)         # (H, R, Dh)

    # out-projection folded per head (no concat): sum_h ctx[h] @ Wo[h]
    attn = lax.dot_general(ctx.astype(bf16), wo_ref[...],
                           (((2,), (1,)), ((0,), (0,))),
                           preferred_element_type=f32)        # (H, R, E)
    attn = jnp.sum(attn, axis=0) + bo_ref[0]                  # (R, E)

    # ---- post-LN residual #1 (torch norm_first=False) ----
    h = _layernorm_f32(x + attn, ln1_w_ref[0], ln1_b_ref[0])

    # ---- feed-forward (ReLU), dropout == identity (eval) ----
    f = jnp.dot(h.astype(bf16), w1_ref[...], preferred_element_type=f32) + b1_ref[0]   # (R, F)
    f = jnp.maximum(f, 0.0)
    g = jnp.dot(f.astype(bf16), w2_ref[...], preferred_element_type=f32) + b2_ref[0]   # (R, E)

    # ---- post-LN residual #2 ----
    out = _layernorm_f32(h + g, ln2_w_ref[0], ln2_b_ref[0])
    o_ref[...] = out.astype(o_ref.dtype)


# ---------------------------------------------------------------------------
# pallas_call wrappers
# ---------------------------------------------------------------------------

_COMPILER_PARAMS = pltpu.CompilerParams(
    dimension_semantics=("parallel",),
    vmem_limit_bytes=32 * 1024 * 1024,
)


def patch_embed(patch_rows, wpT, pos_rows, block_rows):
    Rt, K = patch_rows.shape
    E = wpT.shape[1]
    grid = (Rt // block_rows,)
    cost = pl.CostEstimate(
        flops=int(2 * Rt * K * E),
        transcendentals=0,
        bytes_accessed=int(patch_rows.size * 4 + wpT.size * 2 + pos_rows.size * 4 + Rt * E * 4),
    )
    return pl.pallas_call(
        patch_embed_kernel,
        out_shape=jax.ShapeDtypeStruct((Rt, E), jnp.float32),
        grid=grid,
        in_specs=[
            pl.BlockSpec((block_rows, K), lambda n: (n, 0)),
            _full_spec(wpT),
            pl.BlockSpec((block_rows, E), lambda n: (n, 0)),
        ],
        out_specs=pl.BlockSpec((block_rows, E), lambda n: (n, 0)),
        compiler_params=_COMPILER_PARAMS,
        cost_estimate=cost,
    )(patch_rows, wpT, pos_rows)


def encoder_layer(x_rows, attn_bias, lp, *, block_rows):
    Rt, E = x_rows.shape
    H, _, Dh = lp["wq"].shape
    F = lp["w1"].shape[1]
    grid = (Rt // block_rows,)
    weights = (lp["wq"], lp["wk"], lp["wv"], lp["bq"], lp["bk"], lp["bv"],
               lp["wo"], lp["bo"], lp["ln1_w"], lp["ln1_b"],
               lp["w1"], lp["b1"], lp["w2"], lp["b2"], lp["ln2_w"], lp["ln2_b"])
    weight_bytes = sum(int(w.size) * w.dtype.itemsize for w in weights)
    flops = (3 * 2 * Rt * E * E              # q/k/v projections
             + 4 * H * block_rows * Rt * Dh  # scores + context (block-masked)
             + 2 * Rt * E * E                # output projection
             + 4 * Rt * E * F)               # feed-forward
    cost = pl.CostEstimate(
        flops=int(flops),
        transcendentals=int(H * block_rows * Rt),
        bytes_accessed=int(2 * Rt * E * 4 + weight_bytes + attn_bias.size * 4),
    )
    return pl.pallas_call(
        encoder_layer_kernel,
        out_shape=jax.ShapeDtypeStruct((Rt, E), jnp.float32),
        grid=grid,
        in_specs=[pl.BlockSpec((block_rows, E), lambda n: (n, 0)),
                  _full_spec(attn_bias)]
        + [_full_spec(w) for w in weights],
        out_specs=pl.BlockSpec((block_rows, E), lambda n: (n, 0)),
        compiler_params=_COMPILER_PARAMS,
        cost_estimate=cost,
    )(x_rows, attn_bias, *weights)


# ---------------------------------------------------------------------------
# parameters (torch layout) and one-time kernel-layout conversion
# ---------------------------------------------------------------------------

def init_vit_params(key, *, image_size, patch_size, embed_dim, num_heads, num_layers,
                    in_channels=16, dim_feedforward=2048):
    """Parameters in the PyTorch module's native layout."""
    E, F, C, P = embed_dim, dim_feedforward, in_channels, patch_size
    num_patches = (image_size // patch_size) ** 2
    k_patch, k_pos, k_layers = jax.random.split(key, 3)
    params = {
        "patch_w": 0.02 * jax.random.normal(k_patch, (E, C, P, P), jnp.float32),
        "pos": jax.random.normal(k_pos, (1, num_patches, E), jnp.float32),
        "layers": [],
    }
    del num_heads  # head count only matters at conversion time
    for i in range(num_layers):
        ks = jax.random.split(jax.random.fold_in(k_layers, i), 4)
        params["layers"].append({
            "in_proj_w": 0.02 * jax.random.normal(ks[0], (3 * E, E), jnp.float32),
            "in_proj_b": jnp.zeros((3 * E,), jnp.float32),
            "out_w": 0.02 * jax.random.normal(ks[1], (E, E), jnp.float32),
            "out_b": jnp.zeros((E,), jnp.float32),
            "ln1_w": jnp.ones((E,), jnp.float32),
            "ln1_b": jnp.zeros((E,), jnp.float32),
            "lin1_w": 0.02 * jax.random.normal(ks[2], (F, E), jnp.float32),
            "lin1_b": jnp.zeros((F,), jnp.float32),
            "lin2_w": 0.02 * jax.random.normal(ks[3], (E, F), jnp.float32),
            "lin2_b": jnp.zeros((E,), jnp.float32),
            "ln2_w": jnp.ones((E,), jnp.float32),
            "ln2_b": jnp.zeros((E,), jnp.float32),
        })
    return params


def prepare_kernel_params(params, num_heads):
    """One-time host-side conversion: matmul weights transposed, split per head and cast to
    bf16 (MXU-native); 1/sqrt(Dh) folded into the q projection (exact); biases / LayerNorm
    params kept in f32."""
    E = params["patch_w"].shape[0]
    H = num_heads
    Dh = E // H
    scale = 1.0 / math.sqrt(Dh)
    bf16 = jnp.bfloat16

    kp = {
        "wpT": params["patch_w"].reshape(E, -1).T.astype(bf16),     # (C*P*P, E)
        "pos": params["pos"][0].astype(jnp.float32),                # (NP, E)
        "layers": [],
    }
    for p in params["layers"]:
        wq, wk, wv = jnp.split(p["in_proj_w"], 3, axis=0)           # (E, E) each, y = x @ w.T
        bq, bk, bv = jnp.split(p["in_proj_b"], 3, axis=0)           # (E,) each

        def head(w):                                                # (E_in, E_out) -> (H, E, Dh)
            return w.T.reshape(E, H, Dh).transpose(1, 0, 2)

        kp["layers"].append({
            "wq": (head(wq) * scale).astype(bf16),
            "wk": head(wk).astype(bf16),
            "wv": head(wv).astype(bf16),
            "bq": (bq * scale).reshape(H, 1, Dh),
            "bk": bk.reshape(H, 1, Dh),
            "bv": bv.reshape(H, 1, Dh),
            "wo": p["out_w"].T.reshape(H, Dh, E).astype(bf16),
            "bo": p["out_b"].reshape(1, E),
            "ln1_w": p["ln1_w"].reshape(1, E),
            "ln1_b": p["ln1_b"].reshape(1, E),
            "w1": p["lin1_w"].T.astype(bf16),                       # (E, F)
            "b1": p["lin1_b"].reshape(1, -1),
            "w2": p["lin2_w"].T.astype(bf16),                       # (F, E)
            "b2": p["lin2_b"].reshape(1, E),
            "ln2_w": p["ln2_w"].reshape(1, E),
            "ln2_b": p["ln2_b"].reshape(1, E),
        })
    return kp


# ---------------------------------------------------------------------------
# forward
# ---------------------------------------------------------------------------

def vit_forward(x, kernel_params, patch_size):
    """x: (B, 16, H, W). Returns (B, num_patches, embed_dim) — the module's forward never
    applies self.fc, so neither do we."""
    B, C, Himg, Wimg = x.shape
    P = patch_size
    nph, npw = Himg // P, Wimg // P
    NP = nph * npw
    K = C * P * P
    E = kernel_params["wpT"].shape[1]

    TP = _choose_block_patches(NP, B)          # patches per grid step
    block_rows = TP * B

    # Conv2d(kernel=stride=P, bias=False) == patchify + matmul; rows are patch-major so every
    # kernel consumes plain 2-D (rows, features) tiles with no in-kernel transposes.
    patches = (x.reshape(B, C, nph, P, npw, P)
                .transpose(2, 4, 0, 1, 3, 5)
                .reshape(NP * B, K))
    pos_rows = jnp.broadcast_to(kernel_params["pos"][:, None, :], (NP, B, E)).reshape(NP * B, E)

    # Block-diagonal additive mask: attention only mixes the B rows of the same patch
    # (batch_first=False semantics of nn.TransformerEncoder).
    ids = jnp.arange(block_rows, dtype=jnp.int32) // B
    attn_bias = jnp.where(ids[:, None] == ids[None, :], 0.0, -1e30).astype(jnp.float32)

    h = patch_embed(patches, kernel_params["wpT"], pos_rows, block_rows)   # (NP*B, E)
    for lp in kernel_params["layers"]:
        h = encoder_layer(h, attn_bias, lp, block_rows=block_rows)         # (NP*B, E)
    return h.reshape(NP, B, E).transpose(1, 0, 2)                          # (B, NP, E)


# ---------------------------------------------------------------------------
# demo
# ---------------------------------------------------------------------------

if __name__ == "__main__":
    # Small shapes consistent with the module: 16-channel input (fixed by the Conv2d),
    # 16x16 image, patch 4 -> 16 patches, embed_dim 32, 4 heads, 2 layers.
    image_size, patch_size, embed_dim, num_heads, num_layers = 16, 4, 32, 4, 2
    batch = 2  # num_classes is unused by the module's forward

    key = jax.random.PRNGKey(0)
    kx, kp = jax.random.split(key)
    x = jax.random.normal(kx, (batch, 16, image_size, image_size), jnp.float32)

    params = init_vit_params(kp, image_size=image_size, patch_size=patch_size,
                             embed_dim=embed_dim, num_heads=num_heads,
                             num_layers=num_layers)
    kparams = prepare_kernel_params(params, num_heads)

    out = vit_forward(x, kparams, patch_size)
    out = jax.block_until_ready(out)

    num_patches = (image_size // patch_size) ** 2
    assert out.shape == (batch, num_patches, embed_dim), out.shape
    assert bool(jnp.all(jnp.isfinite(out)))
    print("KERNEL_OK")
</pallas_src>

<mosaic_0001>
module attributes {stable_mosaic.version = 11 : i64} {
  func.func @patch_embed_kernel(%arg0: i32, %arg1: memref<32x256xf32, #tpu.memory_space<vmem>>, %arg2: memref<256x32xbf16, #tpu.memory_space<vmem>>, %arg3: memref<32x32xf32, #tpu.memory_space<vmem>>, %arg4: memref<32x32xf32, #tpu.memory_space<vmem>>) attributes {dimension_semantics = [#tpu.dimension_semantics<parallel>], iteration_bounds = array<i64: 1>, scalar_prefetch = 0 : i64, scratch_operands = 0 : i64, tpu.core_type = #tpu.core_type<tc>, window_params = [{transform_indices = @transform_0, window_bounds = array<i64: 32, 256>}, {pipeline_mode = #tpu.pipeline_mode<synchronous>, transform_indices = @transform_1, window_bounds = array<i64: 256, 32>}, {transform_indices = @transform_2, window_bounds = array<i64: 32, 32>}, {transform_indices = @transform_3, window_bounds = array<i64: 32, 32>}]} {
    %c0 = arith.constant 0 : index
    %c0_0 = arith.constant 0 : index
    %0 = vector.load %arg1[%c0, %c0_0] : memref<32x256xf32, #tpu.memory_space<vmem>>, vector<32x256xf32>
    %1 = arith.truncf %0 : vector<32x256xf32> to vector<32x256xbf16>
    %c0_1 = arith.constant 0 : index
    %c0_2 = arith.constant 0 : index
    %2 = vector.load %arg2[%c0_1, %c0_2] : memref<256x32xbf16, #tpu.memory_space<vmem>>, vector<256x32xbf16>
    %cst = arith.constant dense<0.000000e+00> : vector<32x32xf32>
    %3 = tpu.matmul %1, %2, %cst {dimension_numbers = #tpu.dot_dimension_numbers<[1], [0], [0], [1], [0, 0, 1, 1], [], []>} : vector<32x256xbf16>, vector<256x32xbf16>, vector<32x32xf32> -> vector<32x32xf32>
    %c0_3 = arith.constant 0 : index
    %c0_4 = arith.constant 0 : index
    %4 = vector.load %arg3[%c0_3, %c0_4] : memref<32x32xf32, #tpu.memory_space<vmem>>, vector<32x32xf32>
    %5 = arith.addf %3, %4 : vector<32x32xf32>
    %c0_5 = arith.constant 0 : index
    %c0_6 = arith.constant 0 : index
    %6 = vector.load %arg4[%c0_5, %c0_6] : memref<32x32xf32, #tpu.memory_space<vmem>>, vector<32x32xf32>
    tpu.vector_store %arg4[%c0_5, %c0_6], %5 {strides = array<i32>} : memref<32x32xf32, #tpu.memory_space<vmem>>, vector<32x32xf32>,
    return
  }
  func.func @transform_0(%arg0: i32) -> (i32, i32) {
    %c0_i32 = arith.constant 0 : i32
    %c0_i32_0 = arith.constant 0 : i32
    return %arg0, %c0_i32 : i32, i32
  }
  func.func @transform_1(%arg0: i32) -> (i32, i32) {
    %c0_i32 = arith.constant 0 : i32
    %c0_i32_0 = arith.constant 0 : i32
    %c0_i32_1 = arith.constant 0 : i32
    return %c0_i32, %c0_i32_0 : i32, i32
  }
  func.func @transform_2(%arg0: i32) -> (i32, i32) {
    %c0_i32 = arith.constant 0 : i32
    %c0_i32_0 = arith.constant 0 : i32
    return %arg0, %c0_i32 : i32, i32
  }
  func.func @transform_3(%arg0: i32) -> (i32, i32) {
    %c0_i32 = arith.constant 0 : i32
    %c0_i32_0 = arith.constant 0 : i32
    return %arg0, %c0_i32 : i32, i32
  }
}

</mosaic_0001>

<llo_original>
// kernel: tpu_custom_call.1
$region0: #{tpu_custom_call.1}
  #allocation0 [shape = 'u32[]', space=smem, size = 0x4, offset = 0x4, fixed_abs, tag = 'smem constant byte address 0x4 - core index']
  #allocation1 [shape = 'u32[144,128]{1,0:T(1,128)}', space=vmem, size = 0x12000, scoped, tag = 'internal scratch']
  %s0 = inlined_call_operand.vmem [shape: f32[32,256], index: 0, kind: input, shape index: {}]
  %s1 = inlined_call_operand.vmem [shape: bf16[256,32], index: 1, kind: input, shape index: {}]
  %s2 = inlined_call_operand.vmem [shape: f32[32,32], index: 2, kind: input, shape index: {}]
  %s3 = inlined_call_operand.hbm [shape: f32[32,32], index: 3, kind: output, shape index: {}]
  %s4 = sld [smem:[#allocation0]]
  $region22: #{tpu_custom_call.1} parent=0
    _
  %s6 = ssub.s32 1, %s4
  %s7 = scalar_select 0, %s6, %s4
  $region1: #{tpu_custom_call.1} parent=0
    #allocation2 [shape = 'u8[16384]{0}', space=vmem, size = 0x4000, scoped, tag = 'output window, operand 0, single buffered']
    #allocation3 [shape = 's32[1]{0}', space=sflag, size = 0x4, scoped, tag = 'scoped memory for tpu_custom_call.1']
    %8 = vsyncpa [#allocation3], 0
    // Predicated region
    $region2: #{tpu_custom_call.1} parent=1 // pred_check
      _
    $region3: #{tpu_custom_call.1} parent=1 // pred_check_branch
      %10 = sbr.rel (0) target = $region5
    $region4: #{tpu_custom_call.1} parent=1 // pred_region
      _
    $region5: #{tpu_custom_call.1} parent=1 // pred_fallthru
      _
    // Predicated region
    $region6: #{tpu_custom_call.1} parent=1 // pred_check
      _
    $region7: #{tpu_custom_call.1} parent=1 // pred_check_branch
      %12 = sbr.rel (0) target = $region9
    $region8: #{tpu_custom_call.1} parent=1 // pred_region
      _
    $region9: #{tpu_custom_call.1} parent=1 // pred_fallthru
      _
    // Predicated region
    $region10: #{tpu_custom_call.1} parent=1 // pred_check
      _
    $region11: #{tpu_custom_call.1} parent=1 // pred_check_branch
      %14 = sbr.rel (0) target = $region13
    $region12: #{tpu_custom_call.1} parent=1 // pred_region
      _
    $region13: #{tpu_custom_call.1} parent=1 // pred_fallthru
      _
    %v16 = vld [vmem:[%s0] sm:$0xff]
    %v17 = vld [vmem:[%s0 + $0x8] sm:$0xff]
    %v18 = vld [vmem:[%s0 + $0x10] sm:$0xff]
    %v19 = vld [vmem:[%s0 + $0x18] sm:$0xff]
    %v20 = vld [vmem:[%s0 + $0x20] sm:$0xff]
    %v21 = vld [vmem:[%s0 + $0x28] sm:$0xff]
    %v22 = vld [vmem:[%s0 + $0x30] sm:$0xff]
    %v23 = vld [vmem:[%s0 + $0x38] sm:$0xff]
    %v24 = vpack.c.bf16 %v18, %v16
    %v25 = vpack.c.bf16 %v19, %v17
    %v26 = vpack.c.bf16 %v22, %v20
    %v27 = vpack.c.bf16 %v23, %v21
    %v28 = vld [vmem:[%s1] sm:$0xf]
    %v29 = vld [vmem:[%s1 + $0x4] sm:$0xf]
    %v30 = vld [vmem:[%s1 + $0x8] sm:$0xf]
    %v31 = vld [vmem:[%s1 + $0xc] sm:$0xf]
    %v32 = vld [vmem:[%s1 + $0x10] sm:$0xf]
    %v33 = vld [vmem:[%s1 + $0x14] sm:$0xf]
    %v34 = vld [vmem:[%s1 + $0x18] sm:$0xf]
    %v35 = vld [vmem:[%s1 + $0x1c] sm:$0xf]
    %v36 = vld [vmem:[%s1 + $0x20] sm:$0xf]
    %v37 = vld [vmem:[%s1 + $0x24] sm:$0xf]
    %v38 = vld [vmem:[%s1 + $0x28] sm:$0xf]
    %v39 = vld [vmem:[%s1 + $0x2c] sm:$0xf]
    %v40 = vld [vmem:[%s1 + $0x30] sm:$0xf]
    %v41 = vld [vmem:[%s1 + $0x34] sm:$0xf]
    %v42 = vld [vmem:[%s1 + $0x38] sm:$0xf]
    %v43 = vld [vmem:[%s1 + $0x3c] sm:$0xf]
    %v44 = vld [vmem:[%s1 + $0x40] sm:$0xf]
    %v45 = vld [vmem:[%s1 + $0x44] sm:$0xf]
    %v46 = vld [vmem:[%s1 + $0x48] sm:$0xf]
    %v47 = vld [vmem:[%s1 + $0x4c] sm:$0xf]
    %v48 = vld [vmem:[%s1 + $0x50] sm:$0xf]
    %v49 = vld [vmem:[%s1 + $0x54] sm:$0xf]
    %v50 = vld [vmem:[%s1 + $0x58] sm:$0xf]
    %v51 = vld [vmem:[%s1 + $0x5c] sm:$0xf]
    %v52 = vld [vmem:[%s1 + $0x60] sm:$0xf]
    %v53 = vld [vmem:[%s1 + $0x64] sm:$0xf]
    %v54 = vld [vmem:[%s1 + $0x68] sm:$0xf]
    %v55 = vld [vmem:[%s1 + $0x6c] sm:$0xf]
    %v56 = vld [vmem:[%s1 + $0x70] sm:$0xf]
    %v57 = vld [vmem:[%s1 + $0x74] sm:$0xf]
    %v58 = vld [vmem:[%s1 + $0x78] sm:$0xf]
    %v59 = vld [vmem:[%s1 + $0x7c] sm:$0xf]
    %v60 = vld [vmem:[%s2] sm:$0xff]
    %v61 = vld [vmem:[%s2 + $0x8] sm:$0xff]
    %v62 = vld [vmem:[%s2 + $0x10] sm:$0xff]
    %v63 = vld [vmem:[%s2 + $0x18] sm:$0xff]
    %v96 = vunpack.c.l.b16 %v28
    %v97 = vunpack.c.l.b16 %v29
    %v98 = vunpack.c.l.b16 %v30
    %v99 = vunpack.c.l.b16 %v31
    %v100 = vunpack.c.l.b16 %v32
    %v101 = vunpack.c.l.b16 %v33
    %v102 = vunpack.c.l.b16 %v34
    %v103 = vunpack.c.l.b16 %v35
    %v104 = vunpack.c.l.b16 %v36
    %v105 = vunpack.c.l.b16 %v37
    %v106 = vunpack.c.l.b16 %v38
    %v107 = vunpack.c.l.b16 %v39
    %v108 = vunpack.c.l.b16 %v40
    %v109 = vunpack.c.l.b16 %v41
    %v110 = vunpack.c.l.b16 %v42
    %v111 = vunpack.c.l.b16 %v43
    %v112 = vunpack.c.l.b16 %v44
    %v113 = vunpack.c.l.b16 %v45
    %v114 = vunpack.c.l.b16 %v46
    %v115 = vunpack.c.l.b16 %v47
    %v116 = vunpack.c.l.b16 %v48
    %v117 = vunpack.c.l.b16 %v49
    %v118 = vunpack.c.l.b16 %v50
    %v119 = vunpack.c.l.b16 %v51
    %v120 = vunpack.c.l.b16 %v52
    %v121 = vunpack.c.l.b16 %v53
    %v122 = vunpack.c.l.b16 %v54
    %v123 = vunpack.c.l.b16 %v55
    %v124 = vunpack.c.l.b16 %v56
    %v125 = vunpack.c.l.b16 %v57
    %v126 = vunpack.c.l.b16 %v58
    %v127 = vunpack.c.l.b16 %v59
    %v128 = vpack.c.b16 %v97, %v96
    %v129 = vpack.c.b16 %v99, %v98
    %v130 = vpack.c.b16 %v101, %v100
    %v131 = vpack.c.b16 %v103, %v102
    %v132 = vpack.c.b16 %v105, %v104
    %v133 = vpack.c.b16 %v107, %v106
    %v134 = vpack.c.b16 %v109, %v108
    %v135 = vpack.c.b16 %v111, %v110
    %v136 = vpack.c.b16 %v113, %v112
    %v137 = vpack.c.b16 %v115, %v114
    %v138 = vpack.c.b16 %v117, %v116
    %v139 = vpack.c.b16 %v119, %v118
    %v140 = vpack.c.b16 %v121, %v120
    %v141 = vpack.c.b16 %v123, %v122
    %v142 = vpack.c.b16 %v125, %v124
    %v143 = vpack.c.b16 %v127, %v126
    %160 = vmatprep.subr.bf16.mxu0 0
    %161 = vmatpush1.bf16.msra.mxu0 %v135
    %162 = vmatprep.subr.bf16.mxu0 0
    %163 = vmatpush1.bf16.msra.mxu0 %v134
    %164 = vmatprep.subr.bf16.mxu0 0
    %165 = vmatpush1.bf16.msra.mxu0 %v133
    %166 = vmatprep.subr.bf16.mxu0 0
    %167 = vmatpush1.bf16.msra.mxu0 %v132
    %168 = vmatprep.subr.bf16.mxu0 0
    %169 = vmatpush1.bf16.msra.mxu0 %v131
    %170 = vmatprep.subr.bf16.mxu0 0
    %171 = vmatpush1.bf16.msra.mxu0 %v130
    %172 = vmatprep.subr.bf16.mxu0 0
    %173 = vmatpush1.bf16.msra.mxu0 %v129
    %174 = vmatprep.subr.bf16.mxu0 0
    %175 = vmatpush1.bf16.msra.mxu0 %v128
    %176 = vmatprep.subr.bf16.mxu0 0
    %177 = vmatpush2.bf16.msra.mxu0 %v143
    %178 = vmatprep.subr.bf16.mxu0 0
    %179 = vmatpush2.bf16.msra.mxu0 %v142
    %180 = vmatprep.subr.bf16.mxu0 0
    %181 = vmatpush2.bf16.msra.mxu0 %v141
    %182 = vmatprep.subr.bf16.mxu0 0
    %183 = vmatpush2.bf16.msra.mxu0 %v140
    %184 = vmatprep.subr.bf16.mxu0 0
    %185 = vmatpush2.bf16.msra.mxu0 %v139
    %186 = vmatprep.subr.bf16.mxu0 0
    %187 = vmatpush2.bf16.msra.mxu0 %v138
    %188 = vmatprep.subr.bf16.mxu0 0
    %189 = vmatpush2.bf16.msra.mxu0 %v137
    %190 = vmatprep.subr.bf16.mxu0 0
    %191 = vmatpush2.bf16.msra.mxu0 %v136
    %192 = vmatprep.mubr.bf16.mxu0 %v25
    %193 = vmatmul.mubr.bf16.gmra.mxu0 %v24
    %v194 = vpop.f32.mrf.mxu0
    %v195 = vadd.f32 %v60, %v194
    %v196 = vpop.f32.mrf.mxu0
    %v197 = vpop.f32.mrf.mxu0
    %v198 = vadd.f32 %v61, %v197
    %v199 = vpop.f32.mrf.mxu0
    %200 = vmatprep.mubr.bf16.mxu0 %v27
    %201 = vmatmul.mubr.bf16.gmra.mxu0 %v26
    %v202 = vpop.f32.mrf.mxu0
    %v203 = vadd.f32 %v62, %v202
    %v204 = vpop.f32.mrf.mxu0
    %v205 = vpop.f32.mrf.mxu0
    %v206 = vadd.f32 %v63, %v205
    %v207 = vpop.f32.mrf.mxu0
    %208 = vdwg.mxu0
    %vm209 = vcmask 261120
    %210 = vst.msk [vmem:[#allocation2] sm:$0xff] %vm209, %v195
    %211 = vst.msk [vmem:[#allocation2 + $0x8] sm:$0xff] %vm209, %v198
    %212 = vst.msk [vmem:[#allocation2 + $0x10] sm:$0xff] %vm209, %v203
    %213 = vst.msk [vmem:[#allocation2 + $0x18] sm:$0xff] %vm209, %v206
    // Predicated region
    $region14: #{tpu_custom_call.1} parent=1 // pred_check
      _
    $region15: #{tpu_custom_call.1} parent=1 // pred_check_branch
      %215 = sbr.rel (0) target = $region17
    $region16: #{tpu_custom_call.1} parent=1 // pred_region
      %s217 = ssub.s32 512, 512
      %218 = vsyncadd [#allocation3], %s217
      %s219 = sshll.u32 [#allocation2], 4
      %s220 = int_to_ptr.vmem [resolvable:$true] %s219
      %225 = dma.vmem_to_hbm [thread:$0]  %s220, 512, %s3, [#allocation3], 128, 128, 8
    $region17: #{tpu_custom_call.1} parent=1 // pred_fallthru
      _
    // Predicated region
    $region18: #{tpu_custom_call.1} parent=1 // pred_check
      _
    $region19: #{tpu_custom_call.1} parent=1 // pred_check_branch
      %227 = sbr.rel (0) target = $region21
    $region20: #{tpu_custom_call.1} parent=1 // pred_region
      %228 = dma.done [#allocation3], 512
    $region21: #{tpu_custom_call.1} parent=1 // pred_fallthru
      _
    %229 = vsyncpa [#allocation3], 1

</llo_original>
